<compile_context>
chip_gen: v7x
topology: tpu7x:2x2x1
jax: 0.10.0
libtpu: 0.0.40
codegen_flags: <defaults>
</compile_context>

<pallas_src>
import numpy as np
import jax
import jax.numpy as jnp
from jax.experimental import pallas as pl
from jax.experimental.pallas import tpu as pltpu


# ----------------------------------------------------------------------------
# Glue: axis-angle -> rotation matrix (Rodrigues), same math as
# pytorch3d.transforms.axis_angle_to_matrix. Tiny 3x3, stays in plain JAX.
# ----------------------------------------------------------------------------
def axis_angle_to_matrix(axis_angle):
    # axis_angle: (1, 3)
    angle = jnp.linalg.norm(axis_angle, axis=-1, keepdims=True)        # (1, 1)
    safe = jnp.where(angle > 1e-12, angle, 1.0)
    k = axis_angle / safe                                              # unit axis
    kx, ky, kz = k[..., 0], k[..., 1], k[..., 2]
    zero = jnp.zeros_like(kx)
    Kmat = jnp.stack(
        [
            jnp.stack([zero, -kz, ky], axis=-1),
            jnp.stack([kz, zero, -kx], axis=-1),
            jnp.stack([-ky, kx, zero], axis=-1),
        ],
        axis=-2,
    )                                                                  # (1, 3, 3)
    s = jnp.sin(angle)[..., None]
    c = jnp.cos(angle)[..., None]
    eye = jnp.eye(3, dtype=axis_angle.dtype)[None]
    return eye + s * Kmat + (1.0 - c) * (Kmat @ Kmat)                  # (1, 3, 3)


# ----------------------------------------------------------------------------
# Pallas kernel: one lane-dense tile of
#   out^T_tile = coeff_aug @ basisT_tile + T_col
# where coeff_aug = [s*R @ coeff^T | s*R | 0-pad]  (3B, K_rows)
#       basisT    = [eigvec^T ; base^T ; 0-pad]    (K_rows, n_pad)
# Padded output columns contain T (basis pad columns are zero); they are
# sliced away in the wrapper and never consumed.
# ----------------------------------------------------------------------------
def _ghd_kernel(coeff_ref, basis_ref, t_ref, out_ref):
    acc = jnp.dot(coeff_ref[...], basis_ref[...],
                  preferred_element_type=jnp.float32)      # (3B, tile_n) on MXU
    out_ref[...] = (acc + t_ref[...]).astype(out_ref.dtype)  # lane-broadcast T


# ----------------------------------------------------------------------------
# Init-time preparation (mirrors what the module would do once in __init__).
# ----------------------------------------------------------------------------
def _round_up(x, m):
    return ((x + m - 1) // m) * m


def _choose_tile(n_pad128, tile_n):
    """Pick (tile_columns, grid_steps): grid even and >=2 when possible."""
    if n_pad128 < 256:
        return n_pad128, 1
    g = max(2, -(-n_pad128 // tile_n))          # ceil div, at least 2 steps
    if g % 2:                                   # even step count -> both v7x TCs
        g += 1
    t = _round_up(-(-n_pad128 // g), 128)       # minimal 128-aligned tile
    return t, g


def prepare_ghd_basis(eigvec, base_verts, *, tile_n=8192,
                      storage_dtype=jnp.float32):
    """One-time (init) layout prep.

    Returns basisT (K_rows, n_pad) = [eigvec^T ; base^T ; zero rows],
    with K_rows = round_up(K+3, sublane multiple) and n_pad = tile * grid.
    storage_dtype=jnp.bfloat16 halves the dominant HBM stream (modulo the
    40->48 sublane-padding tax) at ~1e-3 relative error.
    """
    N, K = eigvec.shape
    n_pad128 = _round_up(N, 128)
    t, g = _choose_tile(n_pad128, tile_n)
    n_pad = t * g
    sub_mult = {4: 8, 2: 16, 1: 32}[np.dtype(storage_dtype).itemsize]
    k_rows = _round_up(K + 3, sub_mult)        # 37+3 -> 40 (f32), 48 (bf16)

    basisT = jnp.zeros((k_rows, n_pad), storage_dtype)
    basisT = basisT.at[:K, :N].set(jnp.transpose(eigvec).astype(storage_dtype))
    basisT = basisT.at[K:K + 3, :N].set(
        jnp.transpose(base_verts).astype(storage_dtype))
    return basisT, N, K, t


# ----------------------------------------------------------------------------
# Per-call forward.
# ----------------------------------------------------------------------------
def graph_harmonic_deform_forward(basisT, n_verts, num_basis, ghb_coeff,
                                  R, s, T, *, tile_n,
                                  lane_dense_output=False):
    """Deformed mesh vertices.

    ghb_coeff: (K, 3) -> returns verts_padded (1, N, 3), matching the module;
               (B, K, 3) -> returns (B, N, 3), streaming the eigenbasis once.
    lane_dense_output=True returns the raw (3B, n_pad) buffer + n_verts
    (skips the epilogue slice/transpose pass for fused consumers).
    """
    k_rows, n_pad = basisT.shape
    assert n_pad % tile_n == 0                   # guaranteed by prepare_ghd_basis

    coeff = ghb_coeff if ghb_coeff.ndim == 3 else ghb_coeff[None]
    B = coeff.shape[0]
    K = num_basis

    R_matrix = axis_angle_to_matrix(R)[0]                    # (3, 3)
    sR = s[0, 0] * R_matrix                                  # (3, 3)

    # Tiny wrapper-side work only (O(B*K*9)): fold rotation/scale into the
    # coefficient operand; the base-vert transform rides via the sR block.
    coeff_rot = jnp.einsum('ij,bkj->bik', sR, coeff)         # (B, 3, K)
    coeff_aug = jnp.zeros((B, 3, k_rows), jnp.float32)
    coeff_aug = coeff_aug.at[:, :, :K].set(coeff_rot)
    coeff_aug = coeff_aug.at[:, :, K:K + 3].set(
        jnp.broadcast_to(sR, (B, 3, 3)))
    # Cast to the basis storage dtype (bf16 quantizes the coefficients too).
    coeff_aug = coeff_aug.reshape(B * 3, k_rows).astype(basisT.dtype)

    t_col = jnp.broadcast_to(T.reshape(1, 3), (B, 3)).reshape(B * 3, 1)
    t_col = t_col.astype(jnp.float32)

    out_T = pl.pallas_call(
        _ghd_kernel,
        out_shape=jax.ShapeDtypeStruct((B * 3, n_pad), jnp.float32),
        grid_spec=pltpu.PrefetchScalarGridSpec(
            num_scalar_prefetch=0,
            grid=(n_pad // tile_n,),
            in_specs=[
                pl.BlockSpec((B * 3, k_rows), lambda i: (0, 0)),   # coeff_aug
                pl.BlockSpec((k_rows, tile_n), lambda i: (0, i)),  # basis tile
                pl.BlockSpec((B * 3, 1), lambda i: (0, 0)),        # T column
            ],
            out_specs=pl.BlockSpec((B * 3, tile_n), lambda i: (0, i)),
        ),
        compiler_params=pltpu.CompilerParams(
            dimension_semantics=("parallel",)),
    )(coeff_aug, basisT, t_col)

    if lane_dense_output:
        return out_T, n_verts

    # Epilogue to the module's (B, N, 3) layout; drop when downstream
    # consumers can take the lane-dense buffer directly.
    verts = out_T[:, :n_verts].reshape(B, 3, n_verts).transpose(0, 2, 1)
    return verts                                              # (B, N, 3)


# ----------------------------------------------------------------------------
# Pure-JAX reference for correctness (matches the module's forward exactly).
# ----------------------------------------------------------------------------
def _reference_forward(eigvec, base_verts, ghb_coeff, R, s, T):
    deformation = eigvec @ ghb_coeff
    verts = base_verts + deformation
    R_matrix = axis_angle_to_matrix(R)[0]
    return (verts @ R_matrix.T * s[0, 0] + T)[None]


if __name__ == "__main__":
    key = jax.random.PRNGKey(0)
    k1, k2, k3, k4 = jax.random.split(key, 4)

    N = 250                     # deliberately NOT a multiple of 128 (ragged N)
    num_Basis = 6 * 6 + 1       # 37, as in the module

    # Synthetic "base_shape": deterministic points on the unit sphere.
    base_verts = jax.random.normal(k1, (N, 3), jnp.float32)
    base_verts = base_verts / jnp.linalg.norm(base_verts, axis=1, keepdims=True)

    # __init__ surrogate: the module builds a mixed graph Laplacian from the
    # mesh (cot/norm/standard) and takes the num_Basis smallest eigenvectors
    # via scipy eigsh. Here we build a deterministic ring-graph Laplacian of
    # the same size and take its num_Basis smallest eigenvectors ("SM" order).
    # TODO(synk): cotangent/normalized mesh Laplacian assembly (pytorch3d +
    # scipy.sparse eigsh) has no Pallas equivalent; surrogate Laplacian used.
    idx = jnp.arange(N)
    eye = jnp.eye(N, dtype=jnp.float32)
    L = 2.0 * eye - eye[(idx + 1) % N] - eye[(idx - 1) % N]
    _, eigvecs = jnp.linalg.eigh(L)
    GBH_eigvec = eigvecs[:, :num_Basis].astype(jnp.float32)    # (N, num_Basis)

    # Parameters (shapes from __init__ / reset_affine_param). Small
    # deterministic non-trivial values so the matmul/rotation paths are hit.
    deformation_param = 0.05 * jax.random.normal(k2, (num_Basis, 3), jnp.float32)
    R = 0.3 * jax.random.normal(k3, (1, 3), jnp.float32)       # axis-angle
    s = jnp.array([[1.1]], dtype=jnp.float32)                  # (1, 1)
    T = 0.2 * jax.random.normal(k4, (1, 3), jnp.float32)       # (1, 3)

    # One-time (init) layout preparation: transpose + augment + pad.
    basisT, n_verts, Kb, tile_n = prepare_ghd_basis(GBH_eigvec, base_verts)

    # --- single coefficient set (module forward) ---
    out = graph_harmonic_deform_forward(
        basisT, n_verts, Kb, deformation_param, R, s, T, tile_n=tile_n)
    out = jax.block_until_ready(out)
    ref = _reference_forward(GBH_eigvec, base_verts, deformation_param, R, s, T)
    assert out.shape == (1, N, 3) and out.dtype == jnp.float32
    assert jnp.allclose(out, ref, atol=1e-4, rtol=1e-4), "mismatch vs reference"

    # --- batched coefficient sets (eigenbasis streamed once for B outputs) ---
    coeff_batched = jnp.stack([deformation_param, -0.5 * deformation_param])
    out_b = graph_harmonic_deform_forward(
        basisT, n_verts, Kb, coeff_batched, R, s, T, tile_n=tile_n)
    out_b = jax.block_until_ready(out_b)
    ref_b = jnp.concatenate(
        [_reference_forward(GBH_eigvec, base_verts, coeff_batched[b], R, s, T)
         for b in range(2)], axis=0)
    assert out_b.shape == (2, N, 3)
    assert jnp.allclose(out_b, ref_b, atol=1e-4, rtol=1e-4), "batched mismatch"

    print("KERNEL_OK")
</pallas_src>

<mosaic_0001>
module attributes {stable_mosaic.version = 11 : i64} {
  func.func @_ghd_kernel(%arg0: i32, %arg1: memref<3x40xf32, #tpu.memory_space<vmem>>, %arg2: memref<40x128xf32, #tpu.memory_space<vmem>>, %arg3: memref<3x1xf32, #tpu.memory_space<vmem>>, %arg4: memref<3x128xf32, #tpu.memory_space<vmem>>) attributes {dimension_semantics = [#tpu.dimension_semantics<parallel>], iteration_bounds = array<i64: 2>, scalar_prefetch = 0 : i64, scratch_operands = 0 : i64, tpu.core_type = #tpu.core_type<tc>, window_params = [{pipeline_mode = #tpu.pipeline_mode<synchronous>, transform_indices = @transform_0, window_bounds = array<i64: 3, 40>}, {transform_indices = @transform_1, window_bounds = array<i64: 40, 128>}, {pipeline_mode = #tpu.pipeline_mode<synchronous>, transform_indices = @transform_2, window_bounds = array<i64: 3, 1>}, {transform_indices = @transform_3, window_bounds = array<i64: 3, 128>}]} {
    %c0 = arith.constant 0 : index
    %c0_0 = arith.constant 0 : index
    %0 = vector.load %arg1[%c0, %c0_0] : memref<3x40xf32, #tpu.memory_space<vmem>>, vector<3x40xf32>
    %c0_1 = arith.constant 0 : index
    %c0_2 = arith.constant 0 : index
    %1 = vector.load %arg2[%c0_1, %c0_2] : memref<40x128xf32, #tpu.memory_space<vmem>>, vector<40x128xf32>
    %cst = arith.constant dense<0.000000e+00> : vector<3x128xf32>
    %2 = tpu.matmul %0, %1, %cst {dimension_numbers = #tpu.dot_dimension_numbers<[1], [0], [0], [1], [0, 0, 1, 1], [], []>} : vector<3x40xf32>, vector<40x128xf32>, vector<3x128xf32> -> vector<3x128xf32>
    %c0_3 = arith.constant 0 : index
    %c0_4 = arith.constant 0 : index
    %3 = vector.load %arg3[%c0_3, %c0_4] : memref<3x1xf32, #tpu.memory_space<vmem>>, vector<3x1xf32>
    %4 = vector.broadcast %3 : vector<3x1xf32> to vector<3x128xf32>
    %5 = arith.addf %2, %4 : vector<3x128xf32>
    %c0_5 = arith.constant 0 : index
    %c0_6 = arith.constant 0 : index
    %6 = vector.load %arg4[%c0_5, %c0_6] : memref<3x128xf32, #tpu.memory_space<vmem>>, vector<3x128xf32>
    tpu.vector_store %arg4[%c0_5, %c0_6], %5 {strides = array<i32>} : memref<3x128xf32, #tpu.memory_space<vmem>>, vector<3x128xf32>,
    return
  }
  func.func @transform_0(%arg0: i32) -> (i32, i32) {
    %c0_i32 = arith.constant 0 : i32
    %c0_i32_0 = arith.constant 0 : i32
    %c0_i32_1 = arith.constant 0 : i32
    return %c0_i32, %c0_i32_0 : i32, i32
  }
  func.func @transform_1(%arg0: i32) -> (i32, i32) {
    %c0_i32 = arith.constant 0 : i32
    %c0_i32_0 = arith.constant 0 : i32
    return %c0_i32, %arg0 : i32, i32
  }
  func.func @transform_2(%arg0: i32) -> (i32, i32) {
    %c0_i32 = arith.constant 0 : i32
    %c0_i32_0 = arith.constant 0 : i32
    %c0_i32_1 = arith.constant 0 : i32
    return %c0_i32, %c0_i32_0 : i32, i32
  }
  func.func @transform_3(%arg0: i32) -> (i32, i32) {
    %c0_i32 = arith.constant 0 : i32
    %c0_i32_0 = arith.constant 0 : i32
    return %c0_i32, %arg0 : i32, i32
  }
}

</mosaic_0001>

<llo_original>
// kernel: tpu_custom_call.1
$region0: #{tpu_custom_call.1}
  #allocation0 [shape = 'u32[]', space=smem, size = 0x4, offset = 0x4, fixed_abs, tag = 'smem constant byte address 0x4 - core index']
  #allocation1 [shape = 'u32[144,128]{1,0:T(1,128)}', space=vmem, size = 0x12000, scoped, tag = 'internal scratch']
  %s0 = inlined_call_operand.vmem [shape: f32[3,40], index: 0, kind: input, shape index: {}]
  %s1 = inlined_call_operand.hbm [shape: f32[40,256], index: 1, kind: input, shape index: {}]
  %s2 = inlined_call_operand.vmem [shape: f32[3,1], index: 2, kind: input, shape index: {}]
  %s3 = inlined_call_operand.hbm [shape: f32[3,256], index: 3, kind: output, shape index: {}]
  %s4 = sld [smem:[#allocation0]]
  $region49: #{tpu_custom_call.1} parent=0
    _
  %s6 = ssub.s32 1, %s4
  %s7 = scalar_select 0, %s6, %s4
  $region1: #{tpu_custom_call.1} parent=0
    #allocation2 [shape = 'u8[40960]{0}', space=vmem, size = 0xa000, scoped, tag = 'input window, operand 1']
    #allocation3 [shape = 's32[2]{0}', space=sflag, size = 0x8, scoped, tag = 'scoped memory for tpu_custom_call.1']
    #allocation4 [shape = 's32[2]{0}', space=sflag, size = 0x8, scoped, tag = 'scoped memory for tpu_custom_call.1']
    #allocation5 [shape = 'u8[4096]{0}', space=vmem, size = 0x1000, scoped, tag = 'output window, operand 0']
    %8 = vsyncpa [#allocation3], 0
    %s9 = scalar_lea.sflag [#allocation3], 1
    %10 = vsyncpa %s9, 0
    %11 = vsyncpa [#allocation4], 0
    %s12 = scalar_lea.sflag [#allocation4], 1
    %13 = vsyncpa %s12, 0
    loop: start=0, step=1, limit=4
    $region2: #{tpu_custom_call.1} parent=1 // loop_pre_header
      _
    $region3: #{tpu_custom_call.1} parent=1 // loop_header
      %s15 = sphi 0, %s19
      %p16 = scmp.ge.s32.totalorder %s15, 4
      %s23 = sphi 0, %s23
      %s25 = sphi 0, %s23
      %s26 = sphi 0, %s25
      %s40 = sphi 0, %s26
      %s46 = sphi 0, %s48
      %s49 = sphi 0, %s46
      %s50 = sphi 0, %s49
      %s66 = sphi 0, %s50
      %s70 = sphi 0, %s70
      %s72 = sphi 0, %s70
      %s73 = sphi 0, %s72
      %s87 = sphi 0, %s73
      %s93 = sphi 0, %s95
      %s96 = sphi 0, %s93
      %s97 = sphi 0, %s96
      %s113 = sphi 0, %s97
    $region4: #{tpu_custom_call.1} parent=1 // loop_header_branch
      %18 = sbr.rel (%p16) target = $region8
    $region5: #{tpu_custom_call.1} parent=1 // loop_body
      %s20 = ssub.s32 %s15, 1
      %s21 = ssub.s32 %s15, 2
      %s22 = sadd.s32 %s15, 1
      %s24 = sadd.s32 %s23, 1
      %p27 = scmp.eq.s32.totalorder %s15, 1
      %p28 = scmp.ne.s32.totalorder %s23, %s25
      %p29 = scmp.eq.s32.totalorder %s15, 0
      %p30 = por %p28, %p29
      %p31 = scmp.ne.s32.totalorder %s23, %s25
      %p32 = scmp.eq.s32.totalorder %s20, 1
      %p33 = por %p31, %p32
      %p34 = scmp.ne.s32.totalorder %s25, %s26
      %p35 = scmp.eq.s32.totalorder %s20, 0
      %p36 = por %p34, %p35
      %p37 = scmp.ne.s32.totalorder %s25, %s26
      %p38 = scmp.eq.s32.totalorder %s21, 1
      %p39 = por %p37, %p38
      %p41 = scmp.ne.s32.totalorder %s26, %s40
      %p42 = scmp.eq.s32.totalorder %s21, 0
      %p43 = por %p41, %p42
      %s44 = ssub.s32 %s15, %s22
      %p45 = scmp.eq.s32.totalorder %s44, 0
      %s47 = sadd.s32 %s46, 1
      %s48 = scalar_select %p45, %s46, %s47
      %p51 = pneg %p45
      %p52 = scmp.eq.s32.totalorder %s15, 1
      %p53 = por %p51, %p52
      %p54 = scmp.ne.s32.totalorder %s46, %s49
      %p55 = scmp.eq.s32.totalorder %s15, 0
      %p56 = por %p54, %p55
      %p57 = scmp.ne.s32.totalorder %s46, %s49
      %p58 = scmp.eq.s32.totalorder %s20, 1
      %p59 = por %p57, %p58
      %p60 = scmp.ne.s32.totalorder %s49, %s50
      %p61 = scmp.eq.s32.totalorder %s20, 0
      %p62 = por %p60, %p61
      %p63 = scmp.ne.s32.totalorder %s49, %s50
      %p64 = scmp.eq.s32.totalorder %s21, 1
      %p65 = por %p63, %p64
      %p67 = scmp.ne.s32.totalorder %s50, %s66
      %p68 = scmp.eq.s32.totalorder %s21, 0
      %p69 = por %p67, %p68
      %s71 = sadd.s32 %s70, 1
      %p74 = scmp.eq.s32.totalorder %s15, 1
      %p75 = scmp.ne.s32.totalorder %s70, %s72
      %p76 = scmp.eq.s32.totalorder %s15, 0
      %p77 = por %p75, %p76
      %p78 = scmp.ne.s32.totalorder %s70, %s72
      %p79 = scmp.eq.s32.totalorder %s20, 1
      %p80 = por %p78, %p79
      %p81 = scmp.ne.s32.totalorder %s72, %s73
      %p82 = scmp.eq.s32.totalorder %s20, 0
      %p83 = por %p81, %p82
      %p84 = scmp.ne.s32.totalorder %s72, %s73
      %p85 = scmp.eq.s32.totalorder %s21, 1
      %p86 = por %p84, %p85
      %p88 = scmp.ne.s32.totalorder %s73, %s87
      %p89 = scmp.eq.s32.totalorder %s21, 0
      %p90 = por %p88, %p89
      %s91 = ssub.s32 %s15, %s22
      %p92 = scmp.eq.s32.totalorder %s91, 0
      %s94 = sadd.s32 %s93, 1
      %s95 = scalar_select %p92, %s93, %s94
      %p98 = pneg %p92
      %p99 = scmp.eq.s32.totalorder %s15, 1
      %p100 = por %p98, %p99
      %p101 = scmp.ne.s32.totalorder %s93, %s96
      %p102 = scmp.eq.s32.totalorder %s15, 0
      %p103 = por %p101, %p102
      %p104 = scmp.ne.s32.totalorder %s93, %s96
      %p105 = scmp.eq.s32.totalorder %s20, 1
      %p106 = por %p104, %p105
      %p107 = scmp.ne.s32.totalorder %s96, %s97
      %p108 = scmp.eq.s32.totalorder %s20, 0
      %p109 = por %p107, %p108
      %p110 = scmp.ne.s32.totalorder %s96, %s97
      %p111 = scmp.eq.s32.totalorder %s21, 1
      %p112 = por %p110, %p111
      %p114 = scmp.ne.s32.totalorder %s97, %s113
      %p115 = scmp.eq.s32.totalorder %s21, 0
      %p116 = por %p114, %p115
      %p117 = scmp.le.s32.totalorder 1, %s15
      %p118 = scmp.lt.s32.totalorder %s15, 3
      %p119 = pnand %p117, %p118
      %p120 = pneg %p119
      // Predicated region
      $region9: #{tpu_custom_call.1} parent=5 // pred_check
        _
      $region10: #{tpu_custom_call.1} parent=5 // pred_check_branch
        %122 = sbr.rel (%p119) target = $region12
      $region11: #{tpu_custom_call.1} parent=5 // pred_region
        %s123 = ssub.s32 %s15, 1
        // Predicated region
        $region13: #{tpu_custom_call.1} parent=11 // pred_check
          %p124 = pneg %p36
        $region14: #{tpu_custom_call.1} parent=11 // pred_check_branch
          %126 = sbr.rel (%p124) target = $region16
        $region15: #{tpu_custom_call.1} parent=11 // pred_region
          _
        $region16: #{tpu_custom_call.1} parent=11 // pred_fallthru
          _
        // Predicated region
        $region17: #{tpu_custom_call.1} parent=11 // pred_check
          %p127 = pneg %p83
        $region18: #{tpu_custom_call.1} parent=11 // pred_check_branch
          %129 = sbr.rel (%p127) target = $region20
        $region19: #{tpu_custom_call.1} parent=11 // pred_region
          _
        $region20: #{tpu_custom_call.1} parent=11 // pred_fallthru
          _
      $region12: #{tpu_custom_call.1} parent=5 // pred_fallthru
        _
      %p130 = scmp.lt.s32.totalorder %s15, 2
      // Predicated region
      $region21: #{tpu_custom_call.1} parent=5 // pred_check
        %p131 = pneg %p130
      $region22: #{tpu_custom_call.1} parent=5 // pred_check_branch
        %133 = sbr.rel (%p131) target = $region24
      $region23: #{tpu_custom_call.1} parent=5 // pred_region
        // Predicated region
        $region25: #{tpu_custom_call.1} parent=23 // pred_check
          %p134 = pneg %p56
        $region26: #{tpu_custom_call.1} parent=23 // pred_check_branch
          %136 = sbr.rel (%p134) target = $region28
        $region27: #{tpu_custom_call.1} parent=23 // pred_region
          %s137 = sand.u32 %s46, 1
          %s138 = scalar_lea.sflag [#allocation3], %s137
          %s139 = sand.u32 %s46, 1
          %s140 = smul.addr %s139, 40
          %s141 = scalar_lea.vmem [#allocation2], %s140
          %s143 = ssub.s32 640, 640
          %144 = vsyncadd %s138, %s143
          %s145 = smul.addr %s15, 128
          %s146 = scalar_lea.hbm %s1, %s145
          %s147 = sshll.u32 %s141, 4
          %s148 = int_to_ptr.vmem [resolvable:$true] %s147
          %153 = dma.hbm_to_vmem [thread:$0]  %s146, 640, %s148, %s138, 256, 128, 8
        $region28: #{tpu_custom_call.1} parent=23 // pred_fallthru
          _
      $region24: #{tpu_custom_call.1} parent=5 // pred_fallthru
        _
      %p154 = scmp.le.s32.totalorder 1, %s15
      %p155 = scmp.lt.s32.totalorder %s15, 3
      %p156 = pnand %p154, %p155
      %p157 = pneg %p156
      // Predicated region
      $region29: #{tpu_custom_call.1} parent=5 // pred_check
        _
      $region30: #{tpu_custom_call.1} parent=5 // pred_check_branch
        %159 = sbr.rel (%p156) target = $region32
      $region31: #{tpu_custom_call.1} parent=5 // pred_region
        %s160 = ssub.s32 %s15, 1
        %s161 = sand.u32 %s49, 1
        %s162 = scalar_lea.sflag [#allocation3], %s161
        %s163 = sand.u32 %s49, 1
        %s164 = smul.addr %s163, 40
        %s165 = scalar_lea.vmem [#allocation2], %s164
        // Predicated region
        $region33: #{tpu_custom_call.1} parent=31 // pred_check
          %p166 = pneg %p62
        $region34: #{tpu_custom_call.1} parent=31 // pred_check_branch
          %168 = sbr.rel (%p166) target = $region36
        $region35: #{tpu_custom_call.1} parent=31 // pred_region
          %169 = dma.done %s162, 640
        $region36: #{tpu_custom_call.1} parent=31 // pred_fallthru
          _
        %p170 = pneg %p36
        %p171 = pneg %p33
        %s172 = sand.u32 %s49, 1
        %s173 = scalar_lea.sflag [#allocation3], %s172
        %s174 = sand.u32 %s49, 1
        %s175 = smul.addr %s174, 40
        %s176 = scalar_lea.vmem [#allocation2], %s175
        %p177 = pneg %p62
        %p178 = pneg %p59
        %p179 = pneg %p83
        %p180 = pneg %p80
        %p181 = pneg %p109
        %p182 = pneg %p106
        %s183 = sand.u32 %s96, 1
        %s184 = scalar_lea.sflag [#allocation4], %s183
        %s185 = sand.u32 %s96, 1
        %s186 = smul.addr %s185, 4
        %s187 = scalar_lea.vmem [#allocation5], %s186
        %v188 = vld [vmem:[%s0] sm:$0x7]
        %v189 = vld [vmem:[%s165] sm:$0xff]
        %v190 = vld [vmem:[%s165 + $0x8] sm:$0xff]
        %v191 = vld [vmem:[%s165 + $0x10] sm:$0xff]
        %v192 = vld [vmem:[%s165 + $0x18] sm:$0xff]
        %v193 = vld [vmem:[%s165 + $0x20] sm:$0xff]
        %v194 = vld [vmem:[%s2] sm:$0x7]
        %196 = vset.pattern.permute.xlu0 0
        %197 = vperm.xlu0 %196, %v194
        %v198 = vpop.permute.xlu0 %197
        %vm200 = vcmask 326656
        %v202 = vsel %vm200, %v188, 0
        %204 = vmatprep.subr.mxu0 0.0
        %205 = vmatpush1.msra.mxu0 %v189
        %206 = vmatprep.subr.mxu0 0.0
        %207 = vmatpush1.msra.mxu0 %v190
        %208 = vmatprep.subr.mxu0 0.0
        %209 = vmatpush1.msra.mxu0 %v191
        %210 = vmatprep.subr.mxu0 0.0
        %211 = vmatpush1.msra.mxu0 %v192
        %212 = vmatprep.subr.mxu0 0.0
        %213 = vmatpush1.msra.mxu0 %v193
        %214 = vmatprep.subr.mxu0 0.0
        %215 = vmatpush1.msra.mxu0 0.0
        %216 = vmatprep.subr.mxu0 0.0
        %217 = vmatpush1.msra.mxu0 0.0
        %218 = vmatprep.subr.mxu0 0.0
        %219 = vmatpush1.msra.mxu0 0.0
        %220 = vmatprep.subr.mxu0 0.0
        %221 = vmatpush1.msra.mxu0 0.0
        %222 = vmatprep.subr.mxu0 0.0
        %223 = vmatpush1.msra.mxu0 0.0
        %224 = vmatprep.subr.mxu0 0.0
        %225 = vmatpush1.msra.mxu0 0.0
        %226 = vmatprep.subr.mxu0 0.0
        %227 = vmatpush1.msra.mxu0 0.0
        %228 = vmatprep.subr.mxu0 0.0
        %229 = vmatpush1.msra.mxu0 0.0
        %230 = vmatprep.subr.mxu0 0.0
        %231 = vmatpush1.msra.mxu0 0.0
        %232 = vmatprep.subr.mxu0 0.0
        %233 = vmatpush1.msra.mxu0 0.0
        %234 = vmatprep.subr.mxu0 0.0
        %235 = vmatpush1.msra.mxu0 0.0
        %236 = vmatprep.subr.mxu0 0.0
        %237 = vmatpush1.msra.mxu0 0.0
        %238 = vmatprep.subr.mxu0 0.0
        %239 = vmatpush1.msra.mxu0 0.0
        %240 = vmatprep.subr.mxu0 0.0
        %241 = vmatpush1.msra.mxu0 0.0
        %242 = vmatprep.subr.mxu0 0.0
        %243 = vmatpush1.msra.mxu0 0.0
        %244 = vmatprep.subr.mxu0 0.0
        %245 = vmatpush1.msra.mxu0 0.0
        %246 = vmatprep.subr.mxu0 0.0
        %247 = vmatpush1.msra.mxu0 0.0
        %248 = vmatprep.subr.mxu0 0.0
        %249 = vmatpush1.msra.mxu0 0.0
        %250 = vmatprep.subr.mxu0 0.0
        %251 = vmatpush1.msra.mxu0 0.0
        %252 = vmatprep.subr.mxu0 0.0
        %253 = vmatpush1.msra.mxu0 0.0
        %254 = vmatprep.subr.mxu0 0.0
        %255 = vmatpush1.msra.mxu0 0.0
        %256 = vmatprep.subr.mxu0 0.0
        %257 = vmatpush1.msra.mxu0 0.0
        %258 = vmatprep.subr.mxu0 0.0
        %259 = vmatpush1.msra.mxu0 0.0
        %260 = vmatprep.subr.mxu0 0.0
        %261 = vmatpush1.msra.mxu0 0.0
        %262 = vmatprep.subr.mxu0 0.0
        %263 = vmatpush1.msra.mxu0 0.0
        %264 = vmatprep.subr.mxu0 0.0
        %265 = vmatpush1.msra.mxu0 0.0
        %266 = vmatprep.subr.mxu0 0.0
        %267 = vmatpush1.msra.mxu0 0.0
        %268 = vmatprep.mubr.f32.mxu0 0.0
        %269 = vmatmul.mubr.f32.gmra.mrb[0].mxu0 %v202
        %v270 = vpop.f32.mrb[0].mxu0
        %v271 = vadd.f32 %v198, %v270
        %v272 = vpop.f32.mrb[0].mxu0
        %273 = vdwg.mxu0
        %274 = vst [vmem:[%s187] sm:$0x7] %v271
        %s275 = sand.u32 %s96, 1
        %s276 = scalar_lea.sflag [#allocation4], %s275
        %s277 = sand.u32 %s96, 1
        %s278 = smul.addr %s277, 4
        %s279 = scalar_lea.vmem [#allocation5], %s278
        // Predicated region
        $region37: #{tpu_custom_call.1} parent=31 // pred_check
          %p280 = pneg %p106
        $region38: #{tpu_custom_call.1} parent=31 // pred_check_branch
          %282 = sbr.rel (%p280) target = $region40
        $region39: #{tpu_custom_call.1} parent=31 // pred_region
          %s284 = ssub.s32 64, 64
          %285 = vsyncadd %s276, %s284
          %s286 = smul.addr %s20, 64
          %s287 = scalar_lea.hbm %s3, %s286
          %s289 = sshll.u32 %s279, 4
          %s290 = int_to_ptr.vmem [resolvable:$true] %s289
          %292 = dma.vmem_to_hbm [thread:$0]  %s290, 64, %s287, %s276
        $region40: #{tpu_custom_call.1} parent=31 // pred_fallthru
          _
      $region32: #{tpu_custom_call.1} parent=5 // pred_fallthru
        _
      %p293 = scmp.le.s32.totalorder 2, %s15
      // Predicated region
      $region41: #{tpu_custom_call.1} parent=5 // pred_check
        %p294 = pneg %p293
      $region42: #{tpu_custom_call.1} parent=5 // pred_check_branch
        %296 = sbr.rel (%p294) target = $region44
      $region43: #{tpu_custom_call.1} parent=5 // pred_region
        %s297 = ssub.s32 %s15, 2
        // Predicated region
        $region45: #{tpu_custom_call.1} parent=43 // pred_check
          %p298 = pneg %p112
        $region46: #{tpu_custom_call.1} parent=43 // pred_check_branch
          %300 = sbr.rel (%p298) target = $region48
        $region47: #{tpu_custom_call.1} parent=43 // pred_region
          %s301 = sand.u32 %s97, 1
          %s302 = scalar_lea.sflag [#allocation4], %s301
          %s303 = sand.u32 %s97, 1
          %s304 = smul.addr %s303, 4
          %s305 = scalar_lea.vmem [#allocation5], %s304
          %306 = dma.done %s302, 64
        $region48: #{tpu_custom_call.1} parent=43 // pred_fallthru
          _
      $region44: #{tpu_custom_call.1} parent=5 // pred_fallthru
        _
    $region6: #{tpu_custom_call.1} parent=1 // loop_footer
      %s19 = sadd.s32 1, %s15
    $region7: #{tpu_custom_call.1} parent=1 // loop_footer_branch
      %14 = sbr.rel target = $region3
    $region8: #{tpu_custom_call.1} parent=1 // loop_exit
      _
    %307 = vsyncpa [#allocation3], 1
    %s308 = scalar_lea.sflag [#allocation3], 1
    %309 = vsyncpa %s308, 1
    %310 = vsyncpa [#allocation4], 1
    %s311 = scalar_lea.sflag [#allocation4], 1
    %312 = vsyncpa %s311, 1

</llo_original>
